<compile_context>
chip_gen: v5e
topology: v5e:2x2
jax: 0.10.0
libtpu: 0.0.40
codegen_flags: <defaults>
</compile_context>

<pallas_src>
import math

import jax
import jax.numpy as jnp
from jax.experimental import pallas as pl
from jax.experimental.pallas import tpu as pltpu

NUM_HEADS = 4


def _round_up(n, m):
    return ((n + m - 1) // m) * m


def _state_attn_kernel(x_ref, rhc_ref, a2_ref, b2_ref, gg_ref,
                       p_ref, q_ref, bo_ref, out_ref):
    # x_ref   : (TB, C)      batch tile of raw state values
    # rhc_ref : (C, H*C)     one-hot "repeat channels per head" matrix
    # a2_ref  : (1, H*C)     folded score scale  per (head, channel)
    # b2_ref  : (1, H*C)     folded score offset per (head, channel)
    # gg_ref  : (H*C, H*C)   block-diagonal ones (per-head group-sum matrix)
    # p_ref   : (H*C, D)     folded V-proj * out-proj (x-dependent part)
    # q_ref   : (H*C, D)     folded V-proj * out-proj (constant part)
    # bo_ref  : (1, D)       output-projection bias
    # out_ref : (TB, D)
    x = x_ref[...]                                                       # (TB, C)
    xhc = jnp.dot(x, rhc_ref[...],
                  preferred_element_type=jnp.float32)                    # (TB, H*C)

    # All-heads attention scores, vectorized along lanes (index = h*C + c).
    s = xhc * a2_ref[...] + b2_ref[...]                                  # (TB, H*C)

    # Numerically stable softmax over the C keys of each head.  Subtracting the
    # per-row max (max over all heads >= per-head max) is softmax-invariant per
    # head and keeps exp arguments <= 0.
    m = jnp.max(s, axis=-1, keepdims=True)                               # (TB, 1)
    e = jnp.exp(s - m)                                                   # (TB, H*C)
    denom = jnp.dot(e, gg_ref[...],
                    preferred_element_type=jnp.float32)                  # per-head sums, broadcast to H*C lanes
    pn = e * pl.reciprocal(denom, approx=True)                           # normalized probs
    g = pn * xhc                                                         # x-weighted probs

    out = (jnp.dot(g, p_ref[...], preferred_element_type=jnp.float32)
           + jnp.dot(pn, q_ref[...], preferred_element_type=jnp.float32)
           + bo_ref[...])                                                # (TB, D)
    out_ref[...] = out


def _fold_params(params):
    """Fold all batch-independent linear algebra into small constant matrices."""
    D = params["query"].shape[-1]
    C = params["Wlin"].shape[0]
    H = NUM_HEADS
    hd = D // H
    scale = 1.0 / math.sqrt(hd)
    f32 = jnp.float32

    # Query projection (batch independent): q = query @ Wq^T + bq.
    q = params["query"] @ params["Wq"].T + params["bq"]                  # (1, D)
    qh = q.reshape(H, hd)                                                # (H, hd)

    # Fold q through the K projection:
    #   score[b,c,h] = x_embed[b,c,:] @ S[:,h] + cvec[h]
    WkT = params["Wk"].T                                                 # (D, D)
    S = scale * jnp.einsum("dhj,hj->dh", WkT.reshape(D, H, hd), qh)      # (D, H)
    cvec = scale * jnp.sum(qh * params["bk"].reshape(H, hd), axis=-1)    # (H,)

    # Fold the per-channel Linear(1, D) + pos_embed into the score path:
    #   score[b,c,h] = x[b,c]*A[c,h] + B[c,h]
    bias0 = params["blin"] + params["pos"]                               # (C, D)
    A = params["Wlin"] @ S                                               # (C, H)
    Bm = bias0 @ S + cvec[None, :]                                       # (C, H)
    A2 = A.T.reshape(1, H * C).astype(f32)                               # lane index = h*C + c
    B2 = Bm.T.reshape(1, H * C).astype(f32)

    # Fold V projection + output projection + per-channel Linear:
    #   out[b,:] = sum_{c,h} pn[b,c,h] * (x[b,c]*P[h,c,:] + Q[h,c,:]) + bo
    WvT = params["Wv"].T                                                 # (D, D)
    WoT = params["Wo"].T                                                 # (D, D)
    M = jnp.einsum("dhj,hje->hde", WvT.reshape(D, H, hd),
                   WoT.reshape(H, hd, D))                                # (H, D, D)
    dvec = jnp.einsum("hj,hje->he", params["bv"].reshape(H, hd),
                      WoT.reshape(H, hd, D))                             # (H, D)
    P = jnp.einsum("cd,hde->hce", params["Wlin"], M).reshape(H * C, D).astype(f32)
    Q = (jnp.einsum("cd,hde->hce", bias0, M)
         + dvec[:, None, :]).reshape(H * C, D).astype(f32)

    # Constant layout helpers.
    Rhc = jnp.tile(jnp.eye(C, dtype=f32), (1, H))                        # (C, H*C): xhc = x @ Rhc
    Gm = jnp.repeat(jnp.eye(H, dtype=f32), C, axis=0)                    # (H*C, H)
    GG = Gm @ Gm.T                                                       # (H*C, H*C) block-diag ones

    bo = params["bo"].reshape(1, D).astype(f32)
    return Rhc, A2, B2, GG, P, Q, bo


@jax.jit
def state_attention_encoder(x, params):
    """x: (B, C) float32 -> (B, D) float32 (eval-mode forward)."""
    B, C = x.shape
    D = params["query"].shape[-1]
    H = NUM_HEADS
    HC = H * C

    Rhc, A2, B2, GG, P, Q, bo = _fold_params(params)

    # Batch tiling: amortize per-grid-step overhead across up to 256 rows.
    TB = min(256, _round_up(B, 8))
    Bp = _round_up(B, TB)
    x_pad = x.astype(jnp.float32)
    if Bp != B:
        x_pad = jnp.pad(x_pad, ((0, Bp - B), (0, 0)))

    const = lambda shape: pl.BlockSpec(shape, lambda i: (0, 0))

    out = pl.pallas_call(
        _state_attn_kernel,
        out_shape=jax.ShapeDtypeStruct((Bp, D), jnp.float32),
        grid=(Bp // TB,),
        in_specs=[
            pl.BlockSpec((TB, C), lambda i: (i, 0)),    # x batch tile
            const((C, HC)),                             # Rhc
            const((1, HC)),                             # A2
            const((1, HC)),                             # B2
            const((HC, HC)),                            # GG
            const((HC, D)),                             # P
            const((HC, D)),                             # Q
            const((1, D)),                              # bo
        ],
        out_specs=pl.BlockSpec((TB, D), lambda i: (i, 0)),
        compiler_params=pltpu.CompilerParams(
            dimension_semantics=("parallel",)),
    )(x_pad, Rhc, A2, B2, GG, P, Q, bo)
    return out[:B]


def reference_forward(x, params):
    """Pure-JAX reference mirroring the PyTorch forward (eval mode)."""
    B, C = x.shape
    D = params["query"].shape[-1]
    hd = D // NUM_HEADS

    x_embed = x[:, :, None] * params["Wlin"][None] + params["blin"][None]
    x_embed = x_embed + params["pos"][None]                                  # (B, C, D)

    q = params["query"] @ params["Wq"].T + params["bq"]                      # (1, D)
    q = jnp.broadcast_to(q, (B, 1, D))
    k = x_embed @ params["Wk"].T + params["bk"]                              # (B, C, D)
    v = x_embed @ params["Wv"].T + params["bv"]

    qh = q.reshape(B, 1, NUM_HEADS, hd).transpose(0, 2, 1, 3)                # (B, H, 1, hd)
    kh = k.reshape(B, C, NUM_HEADS, hd).transpose(0, 2, 1, 3)                # (B, H, C, hd)
    vh = v.reshape(B, C, NUM_HEADS, hd).transpose(0, 2, 1, 3)

    s = jnp.einsum("bhqd,bhkd->bhqk", qh, kh) / math.sqrt(hd)
    a = jax.nn.softmax(s, axis=-1)
    o = jnp.einsum("bhqk,bhkd->bhqd", a, vh)                                 # (B, H, 1, hd)
    o = o.transpose(0, 2, 1, 3).reshape(B, 1, D)
    out = o @ params["Wo"].T + params["bo"]
    return out[:, 0]


def init_params(key, state_channel, dim):
    ks = jax.random.split(key, 9)
    D = dim
    in_proj_w = jax.random.normal(ks[0], (3 * D, D), jnp.float32) * 0.1
    in_proj_b = jax.random.normal(ks[1], (3 * D,), jnp.float32) * 0.1
    return {
        # stacked per-channel Linear(1, dim): row i holds linears[i].weight[:, 0] / bias
        "Wlin": jax.random.normal(ks[2], (state_channel, D), jnp.float32) * 0.1,
        "blin": jax.random.normal(ks[3], (state_channel, D), jnp.float32) * 0.1,
        "pos": jax.random.normal(ks[4], (state_channel, D), jnp.float32) * 0.02,
        "query": jax.random.normal(ks[5], (1, D), jnp.float32) * 0.02,
        "Wq": in_proj_w[:D], "bq": in_proj_b[:D],
        "Wk": in_proj_w[D:2 * D], "bk": in_proj_b[D:2 * D],
        "Wv": in_proj_w[2 * D:], "bv": in_proj_b[2 * D:],
        "Wo": jax.random.normal(ks[6], (D, D), jnp.float32) * 0.1,
        "bo": jax.random.normal(ks[7], (D,), jnp.float32) * 0.1,
    }


if __name__ == "__main__":
    B, STATE_CHANNEL, DIM = 32, 6, 32

    key = jax.random.PRNGKey(0)
    pkey, xkey = jax.random.split(key)
    params = init_params(pkey, STATE_CHANNEL, DIM)
    x = jax.random.normal(xkey, (B, STATE_CHANNEL), jnp.float32)

    out = state_attention_encoder(x, params)
    out = jax.block_until_ready(out)

    ref = reference_forward(x, params)
    assert out.shape == (B, DIM), out.shape
    # Tolerance widened for pl.reciprocal(approx=True) in the softmax denominator.
    assert jnp.allclose(out, ref, rtol=5e-3, atol=5e-3), \
        f"max abs err {jnp.max(jnp.abs(out - ref))}"

    print("KERNEL_OK")
</pallas_src>

<mosaic_0001>
module attributes {stable_mosaic.version = 11 : i64} {
  func.func @_state_attn_kernel(%arg0: i32, %arg1: memref<32x6xf32, #tpu.memory_space<vmem>>, %arg2: memref<6x24xf32, #tpu.memory_space<vmem>>, %arg3: memref<1x24xf32, #tpu.memory_space<vmem>>, %arg4: memref<1x24xf32, #tpu.memory_space<vmem>>, %arg5: memref<24x24xf32, #tpu.memory_space<vmem>>, %arg6: memref<24x32xf32, #tpu.memory_space<vmem>>, %arg7: memref<24x32xf32, #tpu.memory_space<vmem>>, %arg8: memref<1x32xf32, #tpu.memory_space<vmem>>, %arg9: memref<32x32xf32, #tpu.memory_space<vmem>>) attributes {dimension_semantics = [#tpu.dimension_semantics<parallel>], iteration_bounds = array<i64: 1>, scalar_prefetch = 0 : i64, scratch_operands = 0 : i64, tpu.core_type = #tpu.core_type<tc>, window_params = [{transform_indices = @transform_0, window_bounds = array<i64: 32, 6>}, {pipeline_mode = #tpu.pipeline_mode<synchronous>, transform_indices = @transform_1, window_bounds = array<i64: 6, 24>}, {pipeline_mode = #tpu.pipeline_mode<synchronous>, transform_indices = @transform_2, window_bounds = array<i64: 1, 24>}, {pipeline_mode = #tpu.pipeline_mode<synchronous>, transform_indices = @transform_3, window_bounds = array<i64: 1, 24>}, {pipeline_mode = #tpu.pipeline_mode<synchronous>, transform_indices = @transform_4, window_bounds = array<i64: 24, 24>}, {pipeline_mode = #tpu.pipeline_mode<synchronous>, transform_indices = @transform_5, window_bounds = array<i64: 24, 32>}, {pipeline_mode = #tpu.pipeline_mode<synchronous>, transform_indices = @transform_6, window_bounds = array<i64: 24, 32>}, {pipeline_mode = #tpu.pipeline_mode<synchronous>, transform_indices = @transform_7, window_bounds = array<i64: 1, 32>}, {transform_indices = @transform_8, window_bounds = array<i64: 32, 32>}]} {
    %c0 = arith.constant 0 : index
    %c0_0 = arith.constant 0 : index
    %0 = vector.load %arg1[%c0, %c0_0] : memref<32x6xf32, #tpu.memory_space<vmem>>, vector<32x6xf32>
    %c0_1 = arith.constant 0 : index
    %c0_2 = arith.constant 0 : index
    %1 = vector.load %arg2[%c0_1, %c0_2] : memref<6x24xf32, #tpu.memory_space<vmem>>, vector<6x24xf32>
    %cst = arith.constant dense<0.000000e+00> : vector<32x24xf32>
    %2 = tpu.matmul %0, %1, %cst {dimension_numbers = #tpu.dot_dimension_numbers<[1], [0], [0], [1], [0, 0, 1, 1], [], []>} : vector<32x6xf32>, vector<6x24xf32>, vector<32x24xf32> -> vector<32x24xf32>
    %c0_3 = arith.constant 0 : index
    %c0_4 = arith.constant 0 : index
    %3 = vector.load %arg3[%c0_3, %c0_4] : memref<1x24xf32, #tpu.memory_space<vmem>>, vector<1x24xf32>
    %4 = vector.broadcast %3 : vector<1x24xf32> to vector<32x24xf32>
    %5 = arith.mulf %2, %4 : vector<32x24xf32>
    %c0_5 = arith.constant 0 : index
    %c0_6 = arith.constant 0 : index
    %6 = vector.load %arg4[%c0_5, %c0_6] : memref<1x24xf32, #tpu.memory_space<vmem>>, vector<1x24xf32>
    %7 = vector.broadcast %6 : vector<1x24xf32> to vector<32x24xf32>
    %8 = arith.addf %5, %7 : vector<32x24xf32>
    %cst_7 = arith.constant dense<0xFF800000> : vector<32xf32>
    %9 = vector.multi_reduction <maximumf>, %8, %cst_7 [1] : vector<32x24xf32> to vector<32xf32>
    %10 = vector.shape_cast %9 : vector<32xf32> to vector<32x1xf32>
    %11 = vector.broadcast %10 : vector<32x1xf32> to vector<32x24xf32>
    %12 = arith.subf %8, %11 : vector<32x24xf32>
    %13 = math.exp %12 : vector<32x24xf32>
    %c0_8 = arith.constant 0 : index
    %c0_9 = arith.constant 0 : index
    %14 = vector.load %arg5[%c0_8, %c0_9] : memref<24x24xf32, #tpu.memory_space<vmem>>, vector<24x24xf32>
    %cst_10 = arith.constant dense<0.000000e+00> : vector<32x24xf32>
    %15 = tpu.matmul %13, %14, %cst_10 {dimension_numbers = #tpu.dot_dimension_numbers<[1], [0], [0], [1], [0, 0, 1, 1], [], []>} : vector<32x24xf32>, vector<24x24xf32>, vector<32x24xf32> -> vector<32x24xf32>
    %16 = tpu.reciprocal %15 {approx = true} : vector<32x24xf32> -> vector<32x24xf32>
    %17 = arith.mulf %13, %16 : vector<32x24xf32>
    %18 = arith.mulf %17, %2 : vector<32x24xf32>
    %c0_11 = arith.constant 0 : index
    %c0_12 = arith.constant 0 : index
    %19 = vector.load %arg6[%c0_11, %c0_12] : memref<24x32xf32, #tpu.memory_space<vmem>>, vector<24x32xf32>
    %cst_13 = arith.constant dense<0.000000e+00> : vector<32x32xf32>
    %20 = tpu.matmul %18, %19, %cst_13 {dimension_numbers = #tpu.dot_dimension_numbers<[1], [0], [0], [1], [0, 0, 1, 1], [], []>} : vector<32x24xf32>, vector<24x32xf32>, vector<32x32xf32> -> vector<32x32xf32>
    %c0_14 = arith.constant 0 : index
    %c0_15 = arith.constant 0 : index
    %21 = vector.load %arg7[%c0_14, %c0_15] : memref<24x32xf32, #tpu.memory_space<vmem>>, vector<24x32xf32>
    %cst_16 = arith.constant dense<0.000000e+00> : vector<32x32xf32>
    %22 = tpu.matmul %17, %21, %cst_16 {dimension_numbers = #tpu.dot_dimension_numbers<[1], [0], [0], [1], [0, 0, 1, 1], [], []>} : vector<32x24xf32>, vector<24x32xf32>, vector<32x32xf32> -> vector<32x32xf32>
    %23 = arith.addf %20, %22 : vector<32x32xf32>
    %c0_17 = arith.constant 0 : index
    %c0_18 = arith.constant 0 : index
    %24 = vector.load %arg8[%c0_17, %c0_18] : memref<1x32xf32, #tpu.memory_space<vmem>>, vector<1x32xf32>
    %25 = vector.broadcast %24 : vector<1x32xf32> to vector<32x32xf32>
    %26 = arith.addf %23, %25 : vector<32x32xf32>
    %c0_19 = arith.constant 0 : index
    %c0_20 = arith.constant 0 : index
    %27 = vector.load %arg9[%c0_19, %c0_20] : memref<32x32xf32, #tpu.memory_space<vmem>>, vector<32x32xf32>
    tpu.vector_store %arg9[%c0_19, %c0_20], %26 {strides = array<i32>} : memref<32x32xf32, #tpu.memory_space<vmem>>, vector<32x32xf32>,
    return
  }
  func.func @transform_0(%arg0: i32) -> (i32, i32) {
    %c0_i32 = arith.constant 0 : i32
    %c0_i32_0 = arith.constant 0 : i32
    return %arg0, %c0_i32 : i32, i32
  }
  func.func @transform_1(%arg0: i32) -> (i32, i32) {
    %c0_i32 = arith.constant 0 : i32
    %c0_i32_0 = arith.constant 0 : i32
    %c0_i32_1 = arith.constant 0 : i32
    return %c0_i32, %c0_i32_0 : i32, i32
  }
  func.func @transform_2(%arg0: i32) -> (i32, i32) {
    %c0_i32 = arith.constant 0 : i32
    %c0_i32_0 = arith.constant 0 : i32
    %c0_i32_1 = arith.constant 0 : i32
    return %c0_i32, %c0_i32_0 : i32, i32
  }
  func.func @transform_3(%arg0: i32) -> (i32, i32) {
    %c0_i32 = arith.constant 0 : i32
    %c0_i32_0 = arith.constant 0 : i32
    %c0_i32_1 = arith.constant 0 : i32
    return %c0_i32, %c0_i32_0 : i32, i32
  }
  func.func @transform_4(%arg0: i32) -> (i32, i32) {
    %c0_i32 = arith.constant 0 : i32
    %c0_i32_0 = arith.constant 0 : i32
    %c0_i32_1 = arith.constant 0 : i32
    return %c0_i32, %c0_i32_0 : i32, i32
  }
  func.func @transform_5(%arg0: i32) -> (i32, i32) {
    %c0_i32 = arith.constant 0 : i32
    %c0_i32_0 = arith.constant 0 : i32
    %c0_i32_1 = arith.constant 0 : i32
    return %c0_i32, %c0_i32_0 : i32, i32
  }
  func.func @transform_6(%arg0: i32) -> (i32, i32) {
    %c0_i32 = arith.constant 0 : i32
    %c0_i32_0 = arith.constant 0 : i32
    %c0_i32_1 = arith.constant 0 : i32
    return %c0_i32, %c0_i32_0 : i32, i32
  }
  func.func @transform_7(%arg0: i32) -> (i32, i32) {
    %c0_i32 = arith.constant 0 : i32
    %c0_i32_0 = arith.constant 0 : i32
    %c0_i32_1 = arith.constant 0 : i32
    return %c0_i32, %c0_i32_0 : i32, i32
  }
  func.func @transform_8(%arg0: i32) -> (i32, i32) {
    %c0_i32 = arith.constant 0 : i32
    %c0_i32_0 = arith.constant 0 : i32
    return %arg0, %c0_i32 : i32, i32
  }
}

</mosaic_0001>

<llo_original>
// kernel: tile.9
$region0: #{tile.9}
  %s0 = inlined_call_operand.vmem [shape: f32[6,4,6], index: 0, kind: input, shape index: {}]
  %s1 = inlined_call_operand.vmem [shape: f32[6,24], index: 1, kind: output, shape index: {}]
  $region1: #{tile.9} parent=0
    #allocation0 [shape = 'u8[24576]{0}', space=vmem, size = 0x6000, scoped, tag = 'scoped mem for input reshape']
    %s3 = ssub.s32 16, 1
    %s4 = scalar_lea.vmem %s0, 20
    %v5 = vld [vmem:[%s4] sm:%s3]
    %s6 = scalar_lea.vmem [#allocation0], 40
    %7 = vst [vmem:[%s6] sm:%s3] %v5
    %s8 = scalar_lea.vmem %s0, 16
    %v9 = vld [vmem:[%s8] sm:%s3]
    %s10 = scalar_lea.vmem [#allocation0], 32
    %11 = vst [vmem:[%s10] sm:%s3] %v9
    %s12 = scalar_lea.vmem %s0, 12
    %v13 = vld [vmem:[%s12] sm:%s3]
    %s14 = scalar_lea.vmem [#allocation0], 24
    %15 = vst [vmem:[%s14] sm:%s3] %v13
    %s16 = scalar_lea.vmem %s0, 8
    %v17 = vld [vmem:[%s16] sm:%s3]
    %s18 = scalar_lea.vmem [#allocation0], 16
    %19 = vst [vmem:[%s18] sm:%s3] %v17
    %s20 = scalar_lea.vmem %s0, 4
    %v21 = vld [vmem:[%s20] sm:%s3]
    %s22 = scalar_lea.vmem [#allocation0], 8
    %23 = vst [vmem:[%s22] sm:%s3] %v21
    %v24 = vld [vmem:[%s0] sm:%s3]
    %25 = vst [vmem:[#allocation0] sm:%s3] %v24
    %v26 = vld [vmem:[#allocation0] ss:$8 sm:$0xf]
    %s27 = smov 48
    %v28 = vld [vmem:[#allocation0] ss:$8 sm:%s27]
    %vm29 = vcmask 1045508
    %v30 = vsel %vm29, %v28, %v26
    %vm31 = vcmask 48128
    %32 = vst.msk [vmem:[%s1] sm:$0x3f] %vm31, %v30
    %s33 = scalar_lea.vmem [#allocation0], 3
    %v34 = vld [vmem:[%s33] ss:$8 sm:$0xf]
    %s35 = scalar_lea.vmem [#allocation0], 3
    %s36 = smov 48
    %v37 = vld [vmem:[%s35] ss:$8 sm:%s36]
    %vm38 = vcmask 1045508
    %v39 = vsel %vm38, %v37, %v34
    %40 = vrot.lane.b32.xlu0 %v39, 18
    %v41 = vpop.permute.xlu0 %40
    %vm42 = vcmask 195728
    %43 = vst.msk [vmem:[%s1] sm:$0x3f] %vm42, %v41
    %s44 = scalar_lea.vmem [#allocation0], 2
    %v45 = vld [vmem:[%s44] ss:$8 sm:$0xf]
    %s46 = scalar_lea.vmem [#allocation0], 2
    %s47 = smov 48
    %v48 = vld [vmem:[%s46] ss:$8 sm:%s47]
    %vm49 = vcmask 1045508
    %v50 = vsel %vm49, %v48, %v45
    %51 = vrot.lane.b32.xlu0 %v50, 12
    %v52 = vpop.permute.xlu0 %51
    %vm53 = vcmask 146528
    %54 = vst.msk [vmem:[%s1] sm:$0x3f] %vm53, %v52
    %s55 = scalar_lea.vmem [#allocation0], 1
    %v56 = vld [vmem:[%s55] ss:$8 sm:$0xf]
    %s57 = scalar_lea.vmem [#allocation0], 1
    %s58 = smov 48
    %v59 = vld [vmem:[%s57] ss:$8 sm:%s58]
    %vm60 = vcmask 1045508
    %v61 = vsel %vm60, %v59, %v56
    %62 = vrot.lane.b32.xlu0 %v61, 6
    %v63 = vpop.permute.xlu0 %62
    %vm64 = vcmask 97328
    %65 = vst.msk [vmem:[%s1] sm:$0x3f] %vm64, %v63

// kernel: state_attention_encoder.1
$region0: #{state_attention_encoder.1}
  #allocation0 [shape = 'u32[]', space=smem, size = 0x4, offset = 0x4, fixed_abs, tag = 'smem constant byte address 0x4 - core index']
  #allocation1 [shape = 'u32[72,128]{1,0:T(1,128)}', space=vmem, size = 0x9000, scoped, tag = 'internal scratch']
  %s0 = inlined_call_operand.vmem [shape: f32[32,6], index: 0, kind: input, shape index: {}]
  %s1 = inlined_call_operand.vmem [shape: f32[6,24], index: 1, kind: input, shape index: {}]
  %s2 = inlined_call_operand.vmem [shape: f32[1,24], index: 2, kind: input, shape index: {}]
  %s3 = inlined_call_operand.vmem [shape: f32[1,24], index: 3, kind: input, shape index: {}]
  %s4 = inlined_call_operand.vmem [shape: f32[24,24], index: 4, kind: input, shape index: {}]
  %s5 = inlined_call_operand.vmem [shape: f32[24,32], index: 5, kind: input, shape index: {}]
  %s6 = inlined_call_operand.vmem [shape: f32[24,32], index: 6, kind: input, shape index: {}]
  %s7 = inlined_call_operand.vmem [shape: f32[1,32], index: 7, kind: input, shape index: {}]
  %s8 = inlined_call_operand.hbm [shape: f32[32,32], index: 8, kind: output, shape index: {}]
  %s9 = sld [smem:[#allocation0]]
  $region42: #{state_attention_encoder.1} parent=0
    _
  %s11 = ssub.s32 1, %s9
  %s12 = scalar_select 0, %s11, %s9
  $region1: #{state_attention_encoder.1} parent=0
    #allocation2 [shape = 'u8[16384]{0}', space=vmem, size = 0x4000, scoped, tag = 'output window, operand 0, single buffered']
    #allocation3 [shape = 's32[1]{0}', space=sflag, size = 0x4, scoped, tag = 'scoped memory for state_attention_encoder.1']
    %13 = vsyncpa [#allocation3], 0
    // Predicated region
    $region2: #{state_attention_encoder.1} parent=1 // pred_check
      _
    $region3: #{state_attention_encoder.1} parent=1 // pred_check_branch
      %15 = sbr.rel (0) target = $region5
    $region4: #{state_attention_encoder.1} parent=1 // pred_region
      _
    $region5: #{state_attention_encoder.1} parent=1 // pred_fallthru
      _
    // Predicated region
    $region6: #{state_attention_encoder.1} parent=1 // pred_check
      _
    $region7: #{state_attention_encoder.1} parent=1 // pred_check_branch
      %17 = sbr.rel (0) target = $region9
    $region8: #{state_attention_encoder.1} parent=1 // pred_region
      _
    $region9: #{state_attention_encoder.1} parent=1 // pred_fallthru
      _
    // Predicated region
    $region10: #{state_attention_encoder.1} parent=1 // pred_check
      _
    $region11: #{state_attention_encoder.1} parent=1 // pred_check_branch
      %19 = sbr.rel (0) target = $region13
    $region12: #{state_attention_encoder.1} parent=1 // pred_region
      _
    $region13: #{state_attention_encoder.1} parent=1 // pred_fallthru
      _
    // Predicated region
    $region14: #{state_attention_encoder.1} parent=1 // pred_check
      _
    $region15: #{state_attention_encoder.1} parent=1 // pred_check_branch
      %21 = sbr.rel (0) target = $region17
    $region16: #{state_attention_encoder.1} parent=1 // pred_region
      _
    $region17: #{state_attention_encoder.1} parent=1 // pred_fallthru
      _
    // Predicated region
    $region18: #{state_attention_encoder.1} parent=1 // pred_check
      _
    $region19: #{state_attention_encoder.1} parent=1 // pred_check_branch
      %23 = sbr.rel (0) target = $region21
    $region20: #{state_attention_encoder.1} parent=1 // pred_region
      _
    $region21: #{state_attention_encoder.1} parent=1 // pred_fallthru
      _
    // Predicated region
    $region22: #{state_attention_encoder.1} parent=1 // pred_check
      _
    $region23: #{state_attention_encoder.1} parent=1 // pred_check_branch
      %25 = sbr.rel (0) target = $region25
    $region24: #{state_attention_encoder.1} parent=1 // pred_region
      _
    $region25: #{state_attention_encoder.1} parent=1 // pred_fallthru
      _
    // Predicated region
    $region26: #{state_attention_encoder.1} parent=1 // pred_check
      _
    $region27: #{state_attention_encoder.1} parent=1 // pred_check_branch
      %27 = sbr.rel (0) target = $region29
    $region28: #{state_attention_encoder.1} parent=1 // pred_region
      _
    $region29: #{state_attention_encoder.1} parent=1 // pred_fallthru
      _
    // Predicated region
    $region30: #{state_attention_encoder.1} parent=1 // pred_check
      _
    $region31: #{state_attention_encoder.1} parent=1 // pred_check_branch
      %29 = sbr.rel (0) target = $region33
    $region32: #{state_attention_encoder.1} parent=1 // pred_region
      _
    $region33: #{state_attention_encoder.1} parent=1 // pred_fallthru
      _
    %v30 = vld [vmem:[%s0] sm:$0xff]
    %v31 = vld [vmem:[%s0 + $0x8] sm:$0xff]
    %v32 = vld [vmem:[%s0 + $0x10] sm:$0xff]
    %v33 = vld [vmem:[%s0 + $0x18] sm:$0xff]
    %v34 = vld [vmem:[%s1] sm:$0x3f]
    %vm35 = vcmask 48128
    %v37 = vsel %vm35, %v30, 0
    %v40 = vsel %vm35, %v31, 0
    %v43 = vsel %vm35, %v32, 0
    %v46 = vsel %vm35, %v33, 0
    %vm48 = vcmask 1045504
    %v50 = vsel %vm48, %v34, 0
    %52 = vmatpush.msra.mxu0 0.0
    %53 = vmatpush.msra.mxu0 0.0
    %54 = vmatpush.msra.mxu0 0.0
    %55 = vmatpush.msra.mxu0 0.0
    %56 = vmatpush.msra.mxu0 0.0
    %57 = vmatpush.msra.mxu0 0.0
    %58 = vmatpush.msra.mxu0 0.0
    %59 = vmatpush.msra.mxu0 0.0
    %60 = vmatpush.msra.mxu0 0.0
    %61 = vmatpush.msra.mxu0 0.0
    %62 = vmatpush.msra.mxu0 0.0
    %63 = vmatpush.msra.mxu0 0.0
    %64 = vmatpush.msra.mxu0 0.0
    %65 = vmatpush.msra.mxu0 0.0
    %66 = vmatpush.msra.mxu0 0.0
    %67 = vmatpush.msra.mxu0 %v50
    %68 = vmatmul.f32.gmra.mxu0 %v37
    %v69 = vpop.f32.mrf.mxu0
    %v70 = vadd.f32 0.0, %v69
    %71 = vmatmul.f32.gmra.mxu0 %v40
    %v72 = vpop.f32.mrf.mxu0
    %v73 = vadd.f32 0.0, %v72
    %74 = vmatmul.f32.gmra.mxu0 %v43
    %v75 = vpop.f32.mrf.mxu0
    %v76 = vadd.f32 0.0, %v75
    %77 = vmatmul.f32.gmra.mxu0 %v46
    %v78 = vpop.f32.mrf.mxu0
    %v79 = vadd.f32 0.0, %v78
    %80 = vdwg.mxu0
    %v81 = vld [vmem:[%s2] sm:$0x1]
    %v83 = vperm.slane %v81, 0
    %v85 = vmul.f32 %v70, %v83
    %v86 = vmul.f32 %v73, %v83
    %v87 = vmul.f32 %v76, %v83
    %v88 = vmul.f32 %v79, %v83
    %v89 = vld [vmem:[%s3] sm:$0x1]
    %v91 = vperm.slane %v89, 0
    %v93 = vadd.f32 %v85, %v91
    %v94 = vadd.f32 %v86, %v91
    %v95 = vadd.f32 %v87, %v91
    %v96 = vadd.f32 %v88, %v91
    %vm97 = vcmask 195584
    %v98 = vsel %vm97, %v93, -inf
    %99 = vmax.xlane.f32.xlu0 %v98
    %v100 = vpop.xlane.xlu0 %99
    %v101 = vsel %vm97, %v94, -inf
    %102 = vmax.xlane.f32.xlu0 %v101
    %v103 = vpop.xlane.xlu0 %102
    %v104 = vsel %vm97, %v95, -inf
    %105 = vmax.xlane.f32.xlu0 %v104
    %v106 = vpop.xlane.xlu0 %105
    %v107 = vsel %vm97, %v96, -inf
    %108 = vmax.xlane.f32.xlu0 %v107
    %v109 = vpop.xlane.xlu0 %108
    %v110 = vsub.f32 %v93, %v100
    %v111 = vsub.f32 %v94, %v103
    %v112 = vsub.f32 %v95, %v106
    %v113 = vsub.f32 %v96, %v109
    %v114 = vmul.f32 %v110, 1.442695
    %v115 = vpow.pop %v114
    %v116 = vmul.f32 %v111, 1.442695
    %v117 = vpow.pop %v116
    %v118 = vmul.f32 %v112, 1.442695
    %v119 = vpow.pop %v118
    %v120 = vmul.f32 %v113, 1.442695
    %v121 = vpow.pop %v120
    %v122 = vld [vmem:[%s4] sm:$0xff]
    %v123 = vld [vmem:[%s4 + $0x8] sm:$0xff]
    %v124 = vld [vmem:[%s4 + $0x10] sm:$0xff]
    %v126 = vsel %vm97, %v115, 0
    %v129 = vsel %vm97, %v117, 0
    %v132 = vsel %vm97, %v119, 0
    %v135 = vsel %vm97, %v121, 0
    %137 = vmatpush.msra.mxu0 0.0
    %138 = vmatpush.msra.mxu0 0.0
    %139 = vmatpush.msra.mxu0 0.0
    %140 = vmatpush.msra.mxu0 0.0
    %141 = vmatpush.msra.mxu0 0.0
    %142 = vmatpush.msra.mxu0 0.0
    %143 = vmatpush.msra.mxu0 0.0
    %144 = vmatpush.msra.mxu0 0.0
    %145 = vmatpush.msra.mxu0 0.0
    %146 = vmatpush.msra.mxu0 0.0
    %147 = vmatpush.msra.mxu0 0.0
    %148 = vmatpush.msra.mxu0 0.0
    %149 = vmatpush.msra.mxu0 0.0
    %150 = vmatpush.msra.mxu0 %v124
    %151 = vmatpush.msra.mxu0 %v123
    %152 = vmatpush.msra.mxu0 %v122
    %153 = vmatmul.f32.gmra.mxu0 %v126
    %v154 = vpop.f32.mrf.mxu0
    %v155 = vadd.f32 0.0, %v154
    %156 = vmatmul.f32.gmra.mxu0 %v129
    %v157 = vpop.f32.mrf.mxu0
    %v158 = vadd.f32 0.0, %v157
    %159 = vmatmul.f32.gmra.mxu0 %v132
    %v160 = vpop.f32.mrf.mxu0
    %v161 = vadd.f32 0.0, %v160
    %162 = vmatmul.f32.gmra.mxu0 %v135
    %v163 = vpop.f32.mrf.mxu0
    %v164 = vadd.f32 0.0, %v163
    %165 = vdwg.mxu0
    %v166 = vrcp.pop %v155
    %v167 = vrcp.pop %v158
    %v168 = vrcp.pop %v161
    %v169 = vrcp.pop %v164
    %v170 = vmul.f32 %v115, %v166
    %v171 = vmul.f32 %v117, %v167
    %v172 = vmul.f32 %v119, %v168
    %v173 = vmul.f32 %v121, %v169
    %v174 = vmul.f32 %v170, %v70
    %v175 = vmul.f32 %v171, %v73
    %v176 = vmul.f32 %v172, %v76
    %v177 = vmul.f32 %v173, %v79
    %v178 = vld [vmem:[%s5] sm:$0xff]
    %v179 = vld [vmem:[%s5 + $0x8] sm:$0xff]
    %v180 = vld [vmem:[%s5 + $0x10] sm:$0xff]
    %v181 = vld [vmem:[%s6] sm:$0xff]
    %v182 = vld [vmem:[%s6 + $0x8] sm:$0xff]
    %v183 = vld [vmem:[%s6 + $0x10] sm:$0xff]
    %v185 = vsel %vm97, %v170, 0
    %v188 = vsel %vm97, %v171, 0
    %v191 = vsel %vm97, %v172, 0
    %v194 = vsel %vm97, %v173, 0
    %196 = vmatpush.msra.mxu0 0.0
    %197 = vmatpush.msra.mxu0 0.0
    %198 = vmatpush.msra.mxu0 0.0
    %199 = vmatpush.msra.mxu0 0.0
    %200 = vmatpush.msra.mxu0 0.0
    %201 = vmatpush.msra.mxu0 0.0
    %202 = vmatpush.msra.mxu0 0.0
    %203 = vmatpush.msra.mxu0 0.0
    %204 = vmatpush.msra.mxu0 0.0
    %205 = vmatpush.msra.mxu0 0.0
    %206 = vmatpush.msra.mxu0 0.0
    %207 = vmatpush.msra.mxu0 0.0
    %208 = vmatpush.msra.mxu0 0.0
    %209 = vmatpush.msra.mxu0 %v183
    %210 = vmatpush.msra.mxu0 %v182
    %211 = vmatpush.msra.mxu0 %v181
    %212 = vmatmul.f32.gmra.mxu0 %v185
    %v213 = vpop.f32.mrf.mxu0
    %v214 = vadd.f32 0.0, %v213
    %215 = vmatmul.f32.gmra.mxu0 %v188
    %v216 = vpop.f32.mrf.mxu0
    %v217 = vadd.f32 0.0, %v216
    %218 = vmatmul.f32.gmra.mxu0 %v191
    %v219 = vpop.f32.mrf.mxu0
    %v220 = vadd.f32 0.0, %v219
    %221 = vmatmul.f32.gmra.mxu0 %v194
    %v222 = vpop.f32.mrf.mxu0
    %v223 = vadd.f32 0.0, %v222
    %224 = vdwg.mxu0
    %v226 = vsel %vm97, %v174, 0
    %v229 = vsel %vm97, %v175, 0
    %v232 = vsel %vm97, %v176, 0
    %v235 = vsel %vm97, %v177, 0
    %237 = vmatpush.msra.mxu0 0.0
    %238 = vmatpush.msra.mxu0 0.0
    %239 = vmatpush.msra.mxu0 0.0
    %240 = vmatpush.msra.mxu0 0.0
    %241 = vmatpush.msra.mxu0 0.0
    %242 = vmatpush.msra.mxu0 0.0
    %243 = vmatpush.msra.mxu0 0.0
    %244 = vmatpush.msra.mxu0 0.0
    %245 = vmatpush.msra.mxu0 0.0
    %246 = vmatpush.msra.mxu0 0.0
    %247 = vmatpush.msra.mxu0 0.0
    %248 = vmatpush.msra.mxu0 0.0
    %249 = vmatpush.msra.mxu0 0.0
    %250 = vmatpush.msra.mxu0 %v180
    %251 = vmatpush.msra.mxu0 %v179
    %252 = vmatpush.msra.mxu0 %v178
    %253 = vmatmul.f32.gmra.mxu0 %v226
    %v254 = vpop.f32.mrf.mxu0
    %v255 = vadd.f32 %v214, %v254
    %256 = vmatmul.f32.gmra.mxu0 %v229
    %v257 = vpop.f32.mrf.mxu0
    %v258 = vadd.f32 %v217, %v257
    %259 = vmatmul.f32.gmra.mxu0 %v232
    %v260 = vpop.f32.mrf.mxu0
    %v261 = vadd.f32 %v220, %v260
    %262 = vmatmul.f32.gmra.mxu0 %v235
    %v263 = vpop.f32.mrf.mxu0
    %v264 = vadd.f32 %v223, %v263
    %265 = vdwg.mxu0
    %v266 = vld [vmem:[%s7] sm:$0x1]
    %v268 = vperm.slane %v266, 0
    %v270 = vadd.f32 %v255, %v268
    %v271 = vadd.f32 %v258, %v268
    %v272 = vadd.f32 %v261, %v268
    %v273 = vadd.f32 %v264, %v268
    %vm274 = vcmask 261120
    %275 = vst.msk [vmem:[#allocation2] sm:$0xff] %vm274, %v270
    %276 = vst.msk [vmem:[#allocation2 + $0x8] sm:$0xff] %vm274, %v271
    %277 = vst.msk [vmem:[#allocation2 + $0x10] sm:$0xff] %vm274, %v272
    %278 = vst.msk [vmem:[#allocation2 + $0x18] sm:$0xff] %vm274, %v273
    // Predicated region
    $region34: #{state_attention_encoder.1} parent=1 // pred_check
      _
    $region35: #{state_attention_encoder.1} parent=1 // pred_check_branch
      %280 = sbr.rel (0) target = $region37
    $region36: #{state_attention_encoder.1} parent=1 // pred_region
      %282 = vsyncadd [#allocation3], 0
      %s283 = sshll.u32 [#allocation2], 4
      %s284 = int_to_ptr.vmem [resolvable:$true] %s283
      %s285 = sshll.u32 %s8, 4
      %s286 = int_to_ptr.hbm [resolvable:$true] %s285
      %291 = dma.vmem_to_hbm [thread:$0]  %s284, 512, %s286, [#allocation3], 128, 128, 8
    $region37: #{state_attention_encoder.1} parent=1 // pred_fallthru
      _
    // Predicated region
    $region38: #{state_attention_encoder.1} parent=1 // pred_check
      _
    $region39: #{state_attention_encoder.1} parent=1 // pred_check_branch
      %293 = sbr.rel (0) target = $region41
    $region40: #{state_attention_encoder.1} parent=1 // pred_region
      %295 = dma.done [#allocation3], 512
    $region41: #{state_attention_encoder.1} parent=1 // pred_fallthru
      _
    %296 = vsyncpa [#allocation3], 1

</llo_original>
